<compile_context>
chip_gen: v7x
topology: tpu7x:2x2x1
jax: 0.10.0
libtpu: 0.0.40
codegen_flags: <defaults>
</compile_context>

<pallas_src>
import functools

import jax
import jax.numpy as jnp
from jax.experimental import pallas as pl
from jax.experimental.pallas import tpu as pltpu


def _round_up(n, m):
    return ((n + m - 1) // m) * m


def _num_tensorcores():
    # v7x has 2 TensorCores per chip that the "parallel" grid axis can shard
    # across; v5e/v6e have 1, where a single big tile is optimal.
    try:
        kind = jax.devices()[0].device_kind.lower()
        if "v7" in kind:
            return 2
    except Exception:
        pass
    return 1


def _critic_kernel(x_ref, u_ref, w1x_ref, w1u_ref, b1_ref, w2_ref, b2_ref,
                   w3_ref, b3_ref, o_ref):
    # Layer 1: split matmul replaces cat([x, u]) @ W1; f32 accumulation on MXU.
    h = jnp.dot(x_ref[...], w1x_ref[...], preferred_element_type=jnp.float32)
    h = h + jnp.dot(u_ref[...], w1u_ref[...], preferred_element_type=jnp.float32)
    h = jnp.maximum(h + b1_ref[...], 0.0)                       # (TB, H), f32

    # Layer 2: cast back to the weight dtype so bf16 weights use the bf16 MXU
    # path (no-op for f32 weights); accumulate in f32.
    h = jnp.dot(h.astype(w2_ref.dtype), w2_ref[...],
                preferred_element_type=jnp.float32)
    h = jnp.maximum(h + b2_ref[...], 0.0)                       # (TB, H), f32

    # Layer 3: hidden -> 1 as a VPU multiply + lane reduction; transpose the
    # (TB, 1) column to a lane-dense (1, TB) row (cheap XLU op, unmasked store).
    q = jnp.sum(h * w3_ref[...], axis=-1, keepdims=True) + b3_ref[...]   # (TB, 1)
    o_ref[...] = jnp.transpose(q).astype(o_ref.dtype)                    # (1, TB)


@functools.partial(jax.jit, static_argnames=("max_block_rows",))
def critic_forward(x, u, params, *, max_block_rows=2048):
    """x: (B, state_dim), u: (B, act_dim). Returns (B, 1) f32 Q-values."""
    w1x, w1u, b1, w2, b2, w3, b3 = params
    B = x.shape[0]
    S = w1x.shape[0]
    A = u.shape[1]

    # Match activation dtype to the matmul weight dtype (no-op for f32).
    x = x.astype(w1x.dtype)
    u = u.astype(w1u.dtype)

    # Sublane packing unit: 8 rows for 32-bit, 16 for bf16 (32 for 8-bit).
    sub = 8 * max(1, 4 // jnp.dtype(w1x.dtype).itemsize)

    # One tile per TensorCore, capped; whole batch handled in 1 step on
    # single-TC parts, 2 steps on v7x so megacore splits the batch.
    n_cores = _num_tensorcores()
    tb = min(max_block_rows, _round_up(-(-B // n_cores), sub))
    b_pad = _round_up(B, tb)
    if b_pad != B:
        x = jnp.pad(x, ((0, b_pad - B), (0, 0)))
        u = jnp.pad(u, ((0, b_pad - B), (0, 0)))
    n_tiles = b_pad // tb

    def _pinned(a):
        # Weights/biases: constant index_map -> fetched once, stay resident.
        # TODO(synk): pipeline_mode=pl.Buffered(1) would drop the unused second
        # buffer of each pinned block (~W2 bytes); negligible at hidden_dim=256.
        return pl.BlockSpec(a.shape, lambda i: (0, 0))

    out = pl.pallas_call(
        _critic_kernel,
        out_shape=jax.ShapeDtypeStruct((n_tiles, tb), jnp.float32),
        grid=(n_tiles,),
        in_specs=[
            pl.BlockSpec((tb, S), lambda i: (i, 0)),   # x tile, pipelined
            pl.BlockSpec((tb, A), lambda i: (i, 0)),   # u tile, pipelined
            _pinned(w1x), _pinned(w1u), _pinned(b1),
            _pinned(w2), _pinned(b2), _pinned(w3), _pinned(b3),
        ],
        out_specs=pl.BlockSpec((1, tb), lambda i: (i, 0)),  # lane-dense row
        compiler_params=pltpu.CompilerParams(
            dimension_semantics=("parallel",),          # batch split across TCs
            vmem_limit_bytes=32 * 1024 * 1024,
        ),
    )(x, u, w1x, w1u, b1, w2, b2, w3, b3)
    return out.reshape(b_pad, 1)[:B]


def init_critic_params(key, state_dim, act_dim, hidden_dim=256,
                       dtype=jnp.float32):
    """PyTorch nn.Linear default init: U(+-1/sqrt(fan_in)).

    Matmul weights are stored transposed to (in, out) and W1 is pre-split into
    its state/action column blocks; biases and the final (1, H) row stay f32."""
    in_dim = state_dim + act_dim
    ks = jax.random.split(key, 7)

    def uinit(k, shape, fan_in, dt):
        bound = 1.0 / (fan_in ** 0.5)
        w = jax.random.uniform(k, shape, jnp.float32, -bound, bound)
        return w.astype(dt)

    w1x = uinit(ks[0], (state_dim, hidden_dim), in_dim, dtype)
    w1u = uinit(ks[1], (act_dim, hidden_dim), in_dim, dtype)
    b1 = uinit(ks[2], (1, hidden_dim), in_dim, jnp.float32)
    w2 = uinit(ks[3], (hidden_dim, hidden_dim), hidden_dim, dtype)
    b2 = uinit(ks[4], (1, hidden_dim), hidden_dim, jnp.float32)
    w3 = uinit(ks[5], (1, hidden_dim), hidden_dim, jnp.float32)
    b3 = uinit(ks[6], (1, 1), hidden_dim, jnp.float32)
    return (w1x, w1u, b1, w2, b2, w3, b3)


def critic_ref(x, u, params):
    """Pure-JAX (f32) reference for correctness checking."""
    w1x, w1u, b1, w2, b2, w3, b3 = params
    f32 = lambda a: a.astype(jnp.float32)
    h = jnp.maximum(x @ f32(w1x) + u @ f32(w1u) + b1, 0.0)
    h = jnp.maximum(h @ f32(w2) + b2, 0.0)
    return jnp.sum(h * w3, axis=-1, keepdims=True) + b3


if __name__ == "__main__":
    key = jax.random.PRNGKey(0)
    batch, state_dim, act_dim, hidden_dim = 64, 12, 4, 256

    k_params, k_x, k_u = jax.random.split(key, 3)
    params = init_critic_params(k_params, state_dim, act_dim, hidden_dim)
    x = jax.random.normal(k_x, (batch, state_dim), jnp.float32)
    u = jax.random.normal(k_u, (batch, act_dim), jnp.float32)

    # float32 path: 1 tile on single-TC parts, 2 tiles on v7x.
    q = jax.block_until_ready(critic_forward(x, u, params))
    q_ref = critic_ref(x, u, params)
    assert q.shape == (batch, 1), q.shape
    assert jnp.allclose(q, q_ref, atol=1e-4, rtol=1e-4), \
        float(jnp.max(jnp.abs(q - q_ref)))

    # Ragged batch: exercises zero-padding of the batch tile.
    q_small = jax.block_until_ready(critic_forward(x[:37], u[:37], params))
    assert q_small.shape == (37, 1), q_small.shape
    assert jnp.allclose(q_small, q_ref[:37], atol=1e-4, rtol=1e-4)

    # bfloat16 matmul path (v6e/v7x MXU dtype); f32 accumulation + epilogue;
    # batch padding rounds to 16 sublanes on this path.
    params_bf16 = init_critic_params(k_params, state_dim, act_dim, hidden_dim,
                                     dtype=jnp.bfloat16)
    q_bf16 = jax.block_until_ready(critic_forward(x, u, params_bf16))
    q_bf16_ref = critic_ref(x, u, params_bf16)
    assert jnp.allclose(q_bf16, q_bf16_ref, atol=5e-2, rtol=5e-2), \
        float(jnp.max(jnp.abs(q_bf16 - q_bf16_ref)))

    print("KERNEL_OK")
</pallas_src>

<mosaic_0001>
module attributes {stable_mosaic.version = 11 : i64} {
  func.func @_critic_kernel(%arg0: i32, %arg1: memref<64x12xf32, #tpu.memory_space<vmem>>, %arg2: memref<64x4xf32, #tpu.memory_space<vmem>>, %arg3: memref<12x256xf32, #tpu.memory_space<vmem>>, %arg4: memref<4x256xf32, #tpu.memory_space<vmem>>, %arg5: memref<1x256xf32, #tpu.memory_space<vmem>>, %arg6: memref<256x256xf32, #tpu.memory_space<vmem>>, %arg7: memref<1x256xf32, #tpu.memory_space<vmem>>, %arg8: memref<1x256xf32, #tpu.memory_space<vmem>>, %arg9: memref<1x1xf32, #tpu.memory_space<vmem>>, %arg10: memref<1x64xf32, #tpu.memory_space<vmem>>) attributes {dimension_semantics = [#tpu.dimension_semantics<parallel>], iteration_bounds = array<i64: 1>, scalar_prefetch = 0 : i64, scratch_operands = 0 : i64, tpu.core_type = #tpu.core_type<tc>, window_params = [{transform_indices = @transform_0, window_bounds = array<i64: 64, 12>}, {transform_indices = @transform_1, window_bounds = array<i64: 64, 4>}, {pipeline_mode = #tpu.pipeline_mode<synchronous>, transform_indices = @transform_2, window_bounds = array<i64: 12, 256>}, {pipeline_mode = #tpu.pipeline_mode<synchronous>, transform_indices = @transform_3, window_bounds = array<i64: 4, 256>}, {pipeline_mode = #tpu.pipeline_mode<synchronous>, transform_indices = @transform_4, window_bounds = array<i64: 1, 256>}, {pipeline_mode = #tpu.pipeline_mode<synchronous>, transform_indices = @transform_5, window_bounds = array<i64: 256, 256>}, {pipeline_mode = #tpu.pipeline_mode<synchronous>, transform_indices = @transform_6, window_bounds = array<i64: 1, 256>}, {pipeline_mode = #tpu.pipeline_mode<synchronous>, transform_indices = @transform_7, window_bounds = array<i64: 1, 256>}, {pipeline_mode = #tpu.pipeline_mode<synchronous>, transform_indices = @transform_8, window_bounds = array<i64: 1, 1>}, {transform_indices = @transform_9, window_bounds = array<i64: 1, 64>}]} {
    %c0 = arith.constant 0 : index
    %c0_0 = arith.constant 0 : index
    %0 = vector.load %arg1[%c0, %c0_0] : memref<64x12xf32, #tpu.memory_space<vmem>>, vector<64x12xf32>
    %c0_1 = arith.constant 0 : index
    %c0_2 = arith.constant 0 : index
    %1 = vector.load %arg3[%c0_1, %c0_2] : memref<12x256xf32, #tpu.memory_space<vmem>>, vector<12x256xf32>
    %cst = arith.constant dense<0.000000e+00> : vector<64x256xf32>
    %2 = tpu.matmul %0, %1, %cst {dimension_numbers = #tpu.dot_dimension_numbers<[1], [0], [0], [1], [0, 0, 1, 1], [], []>} : vector<64x12xf32>, vector<12x256xf32>, vector<64x256xf32> -> vector<64x256xf32>
    %c0_3 = arith.constant 0 : index
    %c0_4 = arith.constant 0 : index
    %3 = vector.load %arg2[%c0_3, %c0_4] : memref<64x4xf32, #tpu.memory_space<vmem>>, vector<64x4xf32>
    %c0_5 = arith.constant 0 : index
    %c0_6 = arith.constant 0 : index
    %4 = vector.load %arg4[%c0_5, %c0_6] : memref<4x256xf32, #tpu.memory_space<vmem>>, vector<4x256xf32>
    %cst_7 = arith.constant dense<0.000000e+00> : vector<64x256xf32>
    %5 = tpu.matmul %3, %4, %cst_7 {dimension_numbers = #tpu.dot_dimension_numbers<[1], [0], [0], [1], [0, 0, 1, 1], [], []>} : vector<64x4xf32>, vector<4x256xf32>, vector<64x256xf32> -> vector<64x256xf32>
    %6 = arith.addf %2, %5 : vector<64x256xf32>
    %c0_8 = arith.constant 0 : index
    %c0_9 = arith.constant 0 : index
    %7 = vector.load %arg5[%c0_8, %c0_9] : memref<1x256xf32, #tpu.memory_space<vmem>>, vector<1x256xf32>
    %8 = vector.broadcast %7 : vector<1x256xf32> to vector<64x256xf32>
    %9 = arith.addf %6, %8 : vector<64x256xf32>
    %cst_10 = arith.constant 0.000000e+00 : f32
    %10 = vector.broadcast %cst_10 : f32 to vector<64x256xf32>
    %11 = arith.maximumf %9, %10 : vector<64x256xf32>
    %c0_11 = arith.constant 0 : index
    %c0_12 = arith.constant 0 : index
    %12 = vector.load %arg6[%c0_11, %c0_12] : memref<256x256xf32, #tpu.memory_space<vmem>>, vector<256x256xf32>
    %cst_13 = arith.constant dense<0.000000e+00> : vector<64x256xf32>
    %13 = tpu.matmul %11, %12, %cst_13 {dimension_numbers = #tpu.dot_dimension_numbers<[1], [0], [0], [1], [0, 0, 1, 1], [], []>} : vector<64x256xf32>, vector<256x256xf32>, vector<64x256xf32> -> vector<64x256xf32>
    %c0_14 = arith.constant 0 : index
    %c0_15 = arith.constant 0 : index
    %14 = vector.load %arg7[%c0_14, %c0_15] : memref<1x256xf32, #tpu.memory_space<vmem>>, vector<1x256xf32>
    %15 = vector.broadcast %14 : vector<1x256xf32> to vector<64x256xf32>
    %16 = arith.addf %13, %15 : vector<64x256xf32>
    %cst_16 = arith.constant 0.000000e+00 : f32
    %17 = vector.broadcast %cst_16 : f32 to vector<64x256xf32>
    %18 = arith.maximumf %16, %17 : vector<64x256xf32>
    %c0_17 = arith.constant 0 : index
    %c0_18 = arith.constant 0 : index
    %19 = vector.load %arg8[%c0_17, %c0_18] : memref<1x256xf32, #tpu.memory_space<vmem>>, vector<1x256xf32>
    %20 = vector.broadcast %19 : vector<1x256xf32> to vector<64x256xf32>
    %21 = arith.mulf %18, %20 : vector<64x256xf32>
    %cst_19 = arith.constant dense<0.000000e+00> : vector<64xf32>
    %22 = vector.multi_reduction <add>, %21, %cst_19 [1] : vector<64x256xf32> to vector<64xf32>
    %23 = vector.shape_cast %22 : vector<64xf32> to vector<64x1xf32>
    %c0_20 = arith.constant 0 : index
    %c0_21 = arith.constant 0 : index
    %24 = vector.load %arg9[%c0_20, %c0_21] : memref<1x1xf32, #tpu.memory_space<vmem>>, vector<1x1xf32>
    %25 = vector.broadcast %24 : vector<1x1xf32> to vector<64x1xf32>
    %26 = arith.addf %23, %25 : vector<64x1xf32>
    %27 = tpu.transpose %26, [1, 0] : vector<64x1xf32> -> vector<1x64xf32>
    %c0_22 = arith.constant 0 : index
    %c0_23 = arith.constant 0 : index
    %28 = vector.load %arg10[%c0_22, %c0_23] : memref<1x64xf32, #tpu.memory_space<vmem>>, vector<1x64xf32>
    tpu.vector_store %arg10[%c0_22, %c0_23], %27 {strides = array<i32>} : memref<1x64xf32, #tpu.memory_space<vmem>>, vector<1x64xf32>,
    return
  }
  func.func @transform_0(%arg0: i32) -> (i32, i32) {
    %c0_i32 = arith.constant 0 : i32
    %c0_i32_0 = arith.constant 0 : i32
    return %arg0, %c0_i32 : i32, i32
  }
  func.func @transform_1(%arg0: i32) -> (i32, i32) {
    %c0_i32 = arith.constant 0 : i32
    %c0_i32_0 = arith.constant 0 : i32
    return %arg0, %c0_i32 : i32, i32
  }
  func.func @transform_2(%arg0: i32) -> (i32, i32) {
    %c0_i32 = arith.constant 0 : i32
    %c0_i32_0 = arith.constant 0 : i32
    %c0_i32_1 = arith.constant 0 : i32
    return %c0_i32, %c0_i32_0 : i32, i32
  }
  func.func @transform_3(%arg0: i32) -> (i32, i32) {
    %c0_i32 = arith.constant 0 : i32
    %c0_i32_0 = arith.constant 0 : i32
    %c0_i32_1 = arith.constant 0 : i32
    return %c0_i32, %c0_i32_0 : i32, i32
  }
  func.func @transform_4(%arg0: i32) -> (i32, i32) {
    %c0_i32 = arith.constant 0 : i32
    %c0_i32_0 = arith.constant 0 : i32
    %c0_i32_1 = arith.constant 0 : i32
    return %c0_i32, %c0_i32_0 : i32, i32
  }
  func.func @transform_5(%arg0: i32) -> (i32, i32) {
    %c0_i32 = arith.constant 0 : i32
    %c0_i32_0 = arith.constant 0 : i32
    %c0_i32_1 = arith.constant 0 : i32
    return %c0_i32, %c0_i32_0 : i32, i32
  }
  func.func @transform_6(%arg0: i32) -> (i32, i32) {
    %c0_i32 = arith.constant 0 : i32
    %c0_i32_0 = arith.constant 0 : i32
    %c0_i32_1 = arith.constant 0 : i32
    return %c0_i32, %c0_i32_0 : i32, i32
  }
  func.func @transform_7(%arg0: i32) -> (i32, i32) {
    %c0_i32 = arith.constant 0 : i32
    %c0_i32_0 = arith.constant 0 : i32
    %c0_i32_1 = arith.constant 0 : i32
    return %c0_i32, %c0_i32_0 : i32, i32
  }
  func.func @transform_8(%arg0: i32) -> (i32, i32) {
    %c0_i32 = arith.constant 0 : i32
    %c0_i32_0 = arith.constant 0 : i32
    %c0_i32_1 = arith.constant 0 : i32
    return %c0_i32, %c0_i32_0 : i32, i32
  }
  func.func @transform_9(%arg0: i32) -> (i32, i32) {
    %c0_i32 = arith.constant 0 : i32
    %c0_i32_0 = arith.constant 0 : i32
    return %arg0, %c0_i32 : i32, i32
  }
}

</mosaic_0001>

<llo_original>
// kernel: critic_forward.1
$region0: #{critic_forward.1}
  #allocation0 [shape = 'u32[]', space=smem, size = 0x4, offset = 0x4, fixed_abs, tag = 'smem constant byte address 0x4 - core index']
  #allocation1 [shape = 'u32[144,128]{1,0:T(1,128)}', space=vmem, size = 0x12000, scoped, tag = 'internal scratch']
  #allocation2 [shape = 'f32[1,1]{1,0:T(1,128)S(1)}', space=vmem, size = 0x200, scoped, tag = 'scoped memory for critic_forward.1']
  %s0 = inlined_call_operand.vmem [shape: f32[64,12], index: 0, kind: input, shape index: {}]
  %s1 = inlined_call_operand.vmem [shape: f32[64,4], index: 1, kind: input, shape index: {}]
  %s2 = inlined_call_operand.vmem [shape: f32[12,256], index: 2, kind: input, shape index: {}]
  %s3 = inlined_call_operand.vmem [shape: f32[4,256], index: 3, kind: input, shape index: {}]
  %s4 = inlined_call_operand.vmem [shape: f32[1,256], index: 4, kind: input, shape index: {}]
  %s5 = inlined_call_operand.hbm [shape: f32[256,256], index: 5, kind: input, shape index: {}]
  %s6 = inlined_call_operand.vmem [shape: f32[1,256], index: 6, kind: input, shape index: {}]
  %s7 = inlined_call_operand.vmem [shape: f32[1,256], index: 7, kind: input, shape index: {}]
  %s8 = inlined_call_operand.<no memory space> [shape: f32[1,1], index: 8, kind: input, shape index: {}]
  %s9 = inlined_call_operand.hbm [shape: f32[1,64], index: 9, kind: output, shape index: {}]
  %s10 = sld [smem:[#allocation0]]
  $region50: #{critic_forward.1} parent=0
    _
  %s12 = ssub.s32 1, %s10
  %s13 = scalar_select 0, %s12, %s10
  %v14 = vstv %s8
  %15 = vst [vmem:[#allocation2] sm:$0x1] %v14
  $region1: #{critic_forward.1} parent=0
    #allocation3 [shape = 'u8[262144]{0}', space=vmem, size = 0x40000, scoped, tag = 'input window, operand 5, single buffered']
    #allocation4 [shape = 's32[1]{0}', space=sflag, size = 0x4, scoped, tag = 'scoped memory for critic_forward.1']
    #allocation5 [shape = 's32[1]{0}', space=sflag, size = 0x4, scoped, tag = 'scoped memory for critic_forward.1']
    #allocation6 [shape = 'u8[512]{0}', space=vmem, size = 0x400, scoped, tag = 'output window, operand 0, single buffered']
    %16 = vsyncpa [#allocation4], 0
    %17 = vsyncpa [#allocation5], 0
    // Predicated region
    $region2: #{critic_forward.1} parent=1 // pred_check
      _
    $region3: #{critic_forward.1} parent=1 // pred_check_branch
      %19 = sbr.rel (0) target = $region5
    $region4: #{critic_forward.1} parent=1 // pred_region
      _
    $region5: #{critic_forward.1} parent=1 // pred_fallthru
      _
    // Predicated region
    $region6: #{critic_forward.1} parent=1 // pred_check
      _
    $region7: #{critic_forward.1} parent=1 // pred_check_branch
      %21 = sbr.rel (0) target = $region9
    $region8: #{critic_forward.1} parent=1 // pred_region
      _
    $region9: #{critic_forward.1} parent=1 // pred_fallthru
      _
    // Predicated region
    $region10: #{critic_forward.1} parent=1 // pred_check
      _
    $region11: #{critic_forward.1} parent=1 // pred_check_branch
      %23 = sbr.rel (0) target = $region13
    $region12: #{critic_forward.1} parent=1 // pred_region
      _
    $region13: #{critic_forward.1} parent=1 // pred_fallthru
      _
    // Predicated region
    $region14: #{critic_forward.1} parent=1 // pred_check
      _
    $region15: #{critic_forward.1} parent=1 // pred_check_branch
      %25 = sbr.rel (0) target = $region17
    $region16: #{critic_forward.1} parent=1 // pred_region
      _
    $region17: #{critic_forward.1} parent=1 // pred_fallthru
      _
    // Predicated region
    $region18: #{critic_forward.1} parent=1 // pred_check
      _
    $region19: #{critic_forward.1} parent=1 // pred_check_branch
      %27 = sbr.rel (0) target = $region21
    $region20: #{critic_forward.1} parent=1 // pred_region
      _
    $region21: #{critic_forward.1} parent=1 // pred_fallthru
      _
    // Predicated region
    $region22: #{critic_forward.1} parent=1 // pred_check
      _
    $region23: #{critic_forward.1} parent=1 // pred_check_branch
      %29 = sbr.rel (0) target = $region25
    $region24: #{critic_forward.1} parent=1 // pred_region
      %s31 = ssub.s32 8192, 8192
      %32 = vsyncadd [#allocation4], %s31
      %s33 = sshll.u32 [#allocation3], 4
      %s34 = int_to_ptr.vmem [resolvable:$true] %s33
      %39 = dma.hbm_to_vmem [thread:$0]  %s5, 8192, %s34, [#allocation4], 256, 256, 16
    $region25: #{critic_forward.1} parent=1 // pred_fallthru
      _
    // Predicated region
    $region26: #{critic_forward.1} parent=1 // pred_check
      _
    $region27: #{critic_forward.1} parent=1 // pred_check_branch
      %41 = sbr.rel (0) target = $region29
    $region28: #{critic_forward.1} parent=1 // pred_region
      _
    $region29: #{critic_forward.1} parent=1 // pred_fallthru
      _
    // Predicated region
    $region30: #{critic_forward.1} parent=1 // pred_check
      _
    $region31: #{critic_forward.1} parent=1 // pred_check_branch
      %43 = sbr.rel (0) target = $region33
    $region32: #{critic_forward.1} parent=1 // pred_region
      _
    $region33: #{critic_forward.1} parent=1 // pred_fallthru
      _
    // Predicated region
    $region34: #{critic_forward.1} parent=1 // pred_check
      _
    $region35: #{critic_forward.1} parent=1 // pred_check_branch
      %45 = sbr.rel (0) target = $region37
    $region36: #{critic_forward.1} parent=1 // pred_region
      _
    $region37: #{critic_forward.1} parent=1 // pred_fallthru
      _
    // Predicated region
    $region38: #{critic_forward.1} parent=1 // pred_check
      _
    $region39: #{critic_forward.1} parent=1 // pred_check_branch
      %47 = sbr.rel (0) target = $region41
    $region40: #{critic_forward.1} parent=1 // pred_region
      %48 = dma.done [#allocation4], 8192
    $region41: #{critic_forward.1} parent=1 // pred_fallthru
      _
    %v49 = vld [vmem:[%s0] sm:$0xff]
    %v50 = vld [vmem:[%s0 + $0x8] sm:$0xff]
    %v51 = vld [vmem:[%s0 + $0x10] sm:$0xff]
    %v52 = vld [vmem:[%s0 + $0x18] sm:$0xff]
    %v53 = vld [vmem:[%s0 + $0x20] sm:$0xff]
    %v54 = vld [vmem:[%s0 + $0x28] sm:$0xff]
    %v55 = vld [vmem:[%s0 + $0x30] sm:$0xff]
    %v56 = vld [vmem:[%s0 + $0x38] sm:$0xff]
    %v57 = vld [vmem:[%s2] sm:$0xff]
    %v58 = vld [vmem:[%s2 + $0x8] sm:$0xff]
    %v59 = vld [vmem:[%s2 + $0x10] sm:$0xf]
    %v60 = vld [vmem:[%s2 + $0x18] sm:$0xf]
    %v61 = vld [vmem:[%s1] sm:$0xff]
    %v62 = vld [vmem:[%s1 + $0x8] sm:$0xff]
    %v63 = vld [vmem:[%s1 + $0x10] sm:$0xff]
    %v64 = vld [vmem:[%s1 + $0x18] sm:$0xff]
    %v65 = vld [vmem:[%s1 + $0x20] sm:$0xff]
    %v66 = vld [vmem:[%s1 + $0x28] sm:$0xff]
    %v67 = vld [vmem:[%s1 + $0x30] sm:$0xff]
    %v68 = vld [vmem:[%s1 + $0x38] sm:$0xff]
    %v69 = vld [vmem:[%s3] sm:$0xff]
    %v71 = vcombine.high %v69, %v69
    %vm72 = vcmask 31744
    %v74 = vsel %vm72, %v61, 0
    %v77 = vsel %vm72, %v62, 0
    %v80 = vsel %vm72, %v63, 0
    %v83 = vsel %vm72, %v64, 0
    %v86 = vsel %vm72, %v65, 0
    %v89 = vsel %vm72, %v66, 0
    %v92 = vsel %vm72, %v67, 0
    %v95 = vsel %vm72, %v68, 0
    %vm97 = vcmask 1043456
    %v98 = vsel %vm97, %v69, 0
    %v100 = vsel %vm97, %v71, 0
    %102 = vmatprep.subr.mxu0 %v100
    %103 = vmatpush1.msra.mxu0 %v98
    %104 = vmatprep.subr.mxu0 0.0
    %105 = vmatpush1.msra.mxu0 0.0
    %106 = vmatprep.subr.mxu0 0.0
    %107 = vmatpush1.msra.mxu0 0.0
    %108 = vmatprep.subr.mxu0 0.0
    %109 = vmatpush1.msra.mxu0 0.0
    %110 = vmatprep.subr.mxu0 0.0
    %111 = vmatpush1.msra.mxu0 0.0
    %112 = vmatprep.subr.mxu0 0.0
    %113 = vmatpush1.msra.mxu0 0.0
    %114 = vmatprep.subr.mxu0 0.0
    %115 = vmatpush1.msra.mxu0 0.0
    %116 = vmatprep.subr.mxu0 0.0
    %117 = vmatpush1.msra.mxu0 0.0
    %118 = vmatprep.subr.mxu0 0.0
    %119 = vmatpush1.msra.mxu0 0.0
    %120 = vmatprep.subr.mxu0 0.0
    %121 = vmatpush1.msra.mxu0 0.0
    %122 = vmatprep.subr.mxu0 0.0
    %123 = vmatpush1.msra.mxu0 0.0
    %124 = vmatprep.subr.mxu0 0.0
    %125 = vmatpush1.msra.mxu0 0.0
    %126 = vmatprep.subr.mxu0 0.0
    %127 = vmatpush1.msra.mxu0 0.0
    %128 = vmatprep.subr.mxu0 0.0
    %129 = vmatpush1.msra.mxu0 0.0
    %130 = vmatprep.subr.mxu0 0.0
    %131 = vmatpush1.msra.mxu0 0.0
    %132 = vmatprep.subr.mxu0 0.0
    %133 = vmatpush1.msra.mxu0 0.0
    %134 = vmatprep.subr.mxu0 0.0
    %135 = vmatpush1.msra.mxu0 0.0
    %136 = vmatprep.subr.mxu0 0.0
    %137 = vmatpush1.msra.mxu0 0.0
    %138 = vmatprep.subr.mxu0 0.0
    %139 = vmatpush1.msra.mxu0 0.0
    %140 = vmatprep.subr.mxu0 0.0
    %141 = vmatpush1.msra.mxu0 0.0
    %142 = vmatprep.subr.mxu0 0.0
    %143 = vmatpush1.msra.mxu0 0.0
    %144 = vmatprep.subr.mxu0 0.0
    %145 = vmatpush1.msra.mxu0 0.0
    %146 = vmatprep.subr.mxu0 0.0
    %147 = vmatpush1.msra.mxu0 0.0
    %148 = vmatprep.subr.mxu0 0.0
    %149 = vmatpush1.msra.mxu0 0.0
    %150 = vmatprep.subr.mxu0 0.0
    %151 = vmatpush1.msra.mxu0 0.0
    %152 = vmatprep.subr.mxu0 0.0
    %153 = vmatpush1.msra.mxu0 0.0
    %154 = vmatprep.subr.mxu0 0.0
    %155 = vmatpush1.msra.mxu0 0.0
    %156 = vmatprep.subr.mxu0 0.0
    %157 = vmatpush1.msra.mxu0 0.0
    %158 = vmatprep.subr.mxu0 0.0
    %159 = vmatpush1.msra.mxu0 0.0
    %160 = vmatprep.subr.mxu0 0.0
    %161 = vmatpush1.msra.mxu0 0.0
    %162 = vmatprep.subr.mxu0 0.0
    %163 = vmatpush1.msra.mxu0 0.0
    %164 = vmatprep.subr.mxu0 0.0
    %165 = vmatpush1.msra.mxu0 0.0
    %166 = vmatprep.mubr.f32.mxu0 0.0
    %167 = vmatmul.mubr.f32.gmra.mrb[0].mxu0 %v74
    %v168 = vpop.f32.mrb[0].mxu0
    %v169 = vadd.f32 0.0, %v168
    %v170 = vpop.f32.mrb[0].mxu0
    %v171 = vadd.f32 0.0, %v170
    %172 = vmatprep.mubr.f32.mxu0 0.0
    %173 = vmatmul.mubr.f32.gmra.mrb[0].mxu0 %v77
    %v174 = vpop.f32.mrb[0].mxu0
    %v175 = vadd.f32 0.0, %v174
    %v176 = vpop.f32.mrb[0].mxu0
    %v177 = vadd.f32 0.0, %v176
    %178 = vmatprep.mubr.f32.mxu0 0.0
    %179 = vmatmul.mubr.f32.gmra.mrb[0].mxu0 %v80
    %v180 = vpop.f32.mrb[0].mxu0
    %v181 = vadd.f32 0.0, %v180
    %v182 = vpop.f32.mrb[0].mxu0
    %v183 = vadd.f32 0.0, %v182
    %184 = vmatprep.mubr.f32.mxu0 0.0
    %185 = vmatmul.mubr.f32.gmra.mrb[0].mxu0 %v83
    %v186 = vpop.f32.mrb[0].mxu0
    %v187 = vadd.f32 0.0, %v186
    %v188 = vpop.f32.mrb[0].mxu0
    %v189 = vadd.f32 0.0, %v188
    %190 = vmatprep.mubr.f32.mxu0 0.0
    %191 = vmatmul.mubr.f32.gmra.mrb[0].mxu0 %v86
    %v192 = vpop.f32.mrb[0].mxu0
    %v193 = vadd.f32 0.0, %v192
    %v194 = vpop.f32.mrb[0].mxu0
    %v195 = vadd.f32 0.0, %v194
    %196 = vmatprep.mubr.f32.mxu0 0.0
    %197 = vmatmul.mubr.f32.gmra.mrb[0].mxu0 %v89
    %v198 = vpop.f32.mrb[0].mxu0
    %v199 = vadd.f32 0.0, %v198
    %v200 = vpop.f32.mrb[0].mxu0
    %v201 = vadd.f32 0.0, %v200
    %202 = vmatprep.mubr.f32.mxu0 0.0
    %203 = vmatmul.mubr.f32.gmra.mrb[0].mxu0 %v92
    %v204 = vpop.f32.mrb[0].mxu0
    %v205 = vadd.f32 0.0, %v204
    %v206 = vpop.f32.mrb[0].mxu0
    %v207 = vadd.f32 0.0, %v206
    %208 = vmatprep.mubr.f32.mxu0 0.0
    %209 = vmatmul.mubr.f32.gmra.mrb[0].mxu0 %v95
    %v210 = vpop.f32.mrb[0].mxu0
    %v211 = vadd.f32 0.0, %v210
    %v212 = vpop.f32.mrb[0].mxu0
    %v213 = vadd.f32 0.0, %v212
    %214 = vdwg.mxu0
    %vm215 = vcmask 97280
    %v217 = vsel %vm215, %v49, 0
    %v220 = vsel %vm215, %v50, 0
    %v223 = vsel %vm215, %v51, 0
    %v226 = vsel %vm215, %v52, 0
    %v229 = vsel %vm215, %v53, 0
    %v232 = vsel %vm215, %v54, 0
    %v235 = vsel %vm215, %v55, 0
    %v238 = vsel %vm215, %v56, 0
    %v241 = vsel %vm97, %v59, 0
    %v244 = vsel %vm97, %v60, 0
    %246 = vmatprep.subr.mxu0 %v58
    %247 = vmatpush1.msra.mxu0 %v57
    %248 = vmatprep.subr.mxu0 %v244
    %249 = vmatpush1.msra.mxu0 %v241
    %250 = vmatprep.subr.mxu0 0.0
    %251 = vmatpush1.msra.mxu0 0.0
    %252 = vmatprep.subr.mxu0 0.0
    %253 = vmatpush1.msra.mxu0 0.0
    %254 = vmatprep.subr.mxu0 0.0
    %255 = vmatpush1.msra.mxu0 0.0
    %256 = vmatprep.subr.mxu0 0.0
    %257 = vmatpush1.msra.mxu0 0.0
    %258 = vmatprep.subr.mxu0 0.0
    %259 = vmatpush1.msra.mxu0 0.0
    %260 = vmatprep.subr.mxu0 0.0
    %261 = vmatpush1.msra.mxu0 0.0
    %262 = vmatprep.subr.mxu0 0.0
    %263 = vmatpush1.msra.mxu0 0.0
    %264 = vmatprep.subr.mxu0 0.0
    %265 = vmatpush1.msra.mxu0 0.0
    %266 = vmatprep.subr.mxu0 0.0
    %267 = vmatpush1.msra.mxu0 0.0
    %268 = vmatprep.subr.mxu0 0.0
    %269 = vmatpush1.msra.mxu0 0.0
    %270 = vmatprep.subr.mxu0 0.0
    %271 = vmatpush1.msra.mxu0 0.0
    %272 = vmatprep.subr.mxu0 0.0
    %273 = vmatpush1.msra.mxu0 0.0
    %274 = vmatprep.subr.mxu0 0.0
    %275 = vmatpush1.msra.mxu0 0.0
    %276 = vmatprep.subr.mxu0 0.0
    %277 = vmatpush1.msra.mxu0 0.0
    %278 = vmatprep.subr.mxu0 0.0
    %279 = vmatpush1.msra.mxu0 0.0
    %280 = vmatprep.subr.mxu0 0.0
    %281 = vmatpush1.msra.mxu0 0.0
    %282 = vmatprep.subr.mxu0 0.0
    %283 = vmatpush1.msra.mxu0 0.0
    %284 = vmatprep.subr.mxu0 0.0
    %285 = vmatpush1.msra.mxu0 0.0
    %286 = vmatprep.subr.mxu0 0.0
    %287 = vmatpush1.msra.mxu0 0.0
    %288 = vmatprep.subr.mxu0 0.0
    %289 = vmatpush1.msra.mxu0 0.0
    %290 = vmatprep.subr.mxu0 0.0
    %291 = vmatpush1.msra.mxu0 0.0
    %292 = vmatprep.subr.mxu0 0.0
    %293 = vmatpush1.msra.mxu0 0.0
    %294 = vmatprep.subr.mxu0 0.0
    %295 = vmatpush1.msra.mxu0 0.0
    %296 = vmatprep.subr.mxu0 0.0
    %297 = vmatpush1.msra.mxu0 0.0
    %298 = vmatprep.subr.mxu0 0.0
    %299 = vmatpush1.msra.mxu0 0.0
    %300 = vmatprep.subr.mxu0 0.0
    %301 = vmatpush1.msra.mxu0 0.0
    %302 = vmatprep.subr.mxu0 0.0
    %303 = vmatpush1.msra.mxu0 0.0
    %304 = vmatprep.subr.mxu0 0.0
    %305 = vmatpush1.msra.mxu0 0.0
    %306 = vmatprep.subr.mxu0 0.0
    %307 = vmatpush1.msra.mxu0 0.0
    %308 = vmatprep.subr.mxu0 0.0
    %309 = vmatpush1.msra.mxu0 0.0
    %310 = vmatprep.mubr.f32.mxu0 0.0
    %311 = vmatmul.mubr.f32.gmra.mrb[0].mxu0 %v217
    %v312 = vpop.f32.mrb[0].mxu0
    %v313 = vadd.f32 %v169, %v312
    %v314 = vpop.f32.mrb[0].mxu0
    %v315 = vadd.f32 %v171, %v314
    %316 = vmatprep.mubr.f32.mxu0 0.0
    %317 = vmatmul.mubr.f32.gmra.mrb[0].mxu0 %v220
    %v318 = vpop.f32.mrb[0].mxu0
    %v319 = vadd.f32 %v175, %v318
    %v320 = vpop.f32.mrb[0].mxu0
    %v321 = vadd.f32 %v177, %v320
    %322 = vmatprep.mubr.f32.mxu0 0.0
    %323 = vmatmul.mubr.f32.gmra.mrb[0].mxu0 %v223
    %v324 = vpop.f32.mrb[0].mxu0
    %v325 = vadd.f32 %v181, %v324
    %v326 = vpop.f32.mrb[0].mxu0
    %v327 = vadd.f32 %v183, %v326
    %328 = vmatprep.mubr.f32.mxu0 0.0
    %329 = vmatmul.mubr.f32.gmra.mrb[0].mxu0 %v226
    %v330 = vpop.f32.mrb[0].mxu0
    %v331 = vadd.f32 %v187, %v330
    %v332 = vpop.f32.mrb[0].mxu0
    %v333 = vadd.f32 %v189, %v332
    %334 = vmatprep.mubr.f32.mxu0 0.0
    %335 = vmatmul.mubr.f32.gmra.mrb[0].mxu0 %v229
    %v336 = vpop.f32.mrb[0].mxu0
    %v337 = vadd.f32 %v193, %v336
    %v338 = vpop.f32.mrb[0].mxu0
    %v339 = vadd.f32 %v195, %v338
    %340 = vmatprep.mubr.f32.mxu0 0.0
    %341 = vmatmul.mubr.f32.gmra.mrb[0].mxu0 %v232
    %v342 = vpop.f32.mrb[0].mxu0
    %v343 = vadd.f32 %v199, %v342
    %v344 = vpop.f32.mrb[0].mxu0
    %v345 = vadd.f32 %v201, %v344
    %346 = vmatprep.mubr.f32.mxu0 0.0
    %347 = vmatmul.mubr.f32.gmra.mrb[0].mxu0 %v235
    %v348 = vpop.f32.mrb[0].mxu0
    %v349 = vadd.f32 %v205, %v348
    %v350 = vpop.f32.mrb[0].mxu0
    %v351 = vadd.f32 %v207, %v350
    %352 = vmatprep.mubr.f32.mxu0 0.0
    %353 = vmatmul.mubr.f32.gmra.mrb[0].mxu0 %v238
    %v354 = vpop.f32.mrb[0].mxu0
    %v355 = vadd.f32 %v211, %v354
    %v356 = vpop.f32.mrb[0].mxu0
    %v357 = vadd.f32 %v213, %v356
    %358 = vdwg.mxu0
    %v359 = vld [vmem:[%s4] sm:$0x3]
    %v361 = vlaneseq
    %v362 = vshrl.u32 %v361, 7
    %v363 = vsub.s32 0, %v362
    %v364 = vrot.slane %v359, %v363
    %v365 = vlaneseq
    %v366 = vshrl.u32 %v365, 7
    %v367 = vsub.s32 1, %v366
    %v368 = vrot.slane %v359, %v367
    %v371 = vadd.f32 %v313, %v364
    %v372 = vadd.f32 %v315, %v368
    %v373 = vadd.f32 %v319, %v364
    %v374 = vadd.f32 %v321, %v368
    %v375 = vadd.f32 %v325, %v364
    %v376 = vadd.f32 %v327, %v368
    %v377 = vadd.f32 %v331, %v364
    %v378 = vadd.f32 %v333, %v368
    %v379 = vadd.f32 %v337, %v364
    %v380 = vadd.f32 %v339, %v368
    %v381 = vadd.f32 %v343, %v364
    %v382 = vadd.f32 %v345, %v368
    %v383 = vadd.f32 %v349, %v364
    %v384 = vadd.f32 %v351, %v368
    %v385 = vadd.f32 %v355, %v364
    %v386 = vadd.f32 %v357, %v368
    %v387 = vmax.f32 %v371, 0.0
    %v388 = vmax.f32 %v372, 0.0
    %v389 = vmax.f32 %v373, 0.0
    %v390 = vmax.f32 %v374, 0.0
    %v391 = vmax.f32 %v375, 0.0
    %v392 = vmax.f32 %v376, 0.0
    %v393 = vmax.f32 %v377, 0.0
    %v394 = vmax.f32 %v378, 0.0
    %v395 = vmax.f32 %v379, 0.0
    %v396 = vmax.f32 %v380, 0.0
    %v397 = vmax.f32 %v381, 0.0
    %v398 = vmax.f32 %v382, 0.0
    %v399 = vmax.f32 %v383, 0.0
    %v400 = vmax.f32 %v384, 0.0
    %v401 = vmax.f32 %v385, 0.0
    %v402 = vmax.f32 %v386, 0.0
    %v403 = vld [vmem:[#allocation3] sm:$0xff]
    %v404 = vld [vmem:[#allocation3 + $0x8] sm:$0xff]
    %v405 = vld [vmem:[#allocation3 + $0x10] sm:$0xff]
    %v406 = vld [vmem:[#allocation3 + $0x18] sm:$0xff]
    %v407 = vld [vmem:[#allocation3 + $0x20] sm:$0xff]
    %v408 = vld [vmem:[#allocation3 + $0x28] sm:$0xff]
    %v409 = vld [vmem:[#allocation3 + $0x30] sm:$0xff]
    %v410 = vld [vmem:[#allocation3 + $0x38] sm:$0xff]
    %v411 = vld [vmem:[#allocation3 + $0x40] sm:$0xff]
    %v412 = vld [vmem:[#allocation3 + $0x48] sm:$0xff]
    %v413 = vld [vmem:[#allocation3 + $0x50] sm:$0xff]
    %v414 = vld [vmem:[#allocation3 + $0x58] sm:$0xff]
    %v415 = vld [vmem:[#allocation3 + $0x60] sm:$0xff]
    %v416 = vld [vmem:[#allocation3 + $0x68] sm:$0xff]
    %v417 = vld [vmem:[#allocation3 + $0x70] sm:$0xff]
    %v418 = vld [vmem:[#allocation3 + $0x78] sm:$0xff]
    %v419 = vld [vmem:[#allocation3 + $0x80] sm:$0xff]
    %v420 = vld [vmem:[#allocation3 + $0x88] sm:$0xff]
    %v421 = vld [vmem:[#allocation3 + $0x90] sm:$0xff]
    %v422 = vld [vmem:[#allocation3 + $0x98] sm:$0xff]
    %v423 = vld [vmem:[#allocation3 + $0xa0] sm:$0xff]
    %v424 = vld [vmem:[#allocation3 + $0xa8] sm:$0xff]
    %v425 = vld [vmem:[#allocation3 + $0xb0] sm:$0xff]
    %v426 = vld [vmem:[#allocation3 + $0xb8] sm:$0xff]
    %v427 = vld [vmem:[#allocation3 + $0xc0] sm:$0xff]
    %v428 = vld [vmem:[#allocation3 + $0xc8] sm:$0xff]
    %v429 = vld [vmem:[#allocation3 + $0xd0] sm:$0xff]
    %v430 = vld [vmem:[#allocation3 + $0xd8] sm:$0xff]
    %v431 = vld [vmem:[#allocation3 + $0xe0] sm:$0xff]
    %v432 = vld [vmem:[#allocation3 + $0xe8] sm:$0xff]
    %v433 = vld [vmem:[#allocation3 + $0xf0] sm:$0xff]
    %v434 = vld [vmem:[#allocation3 + $0xf8] sm:$0xff]
    %v435 = vld [vmem:[#allocation3 + $0x100] sm:$0xff]
    %v436 = vld [vmem:[#allocation3 + $0x108] sm:$0xff]
    %v437 = vld [vmem:[#allocation3 + $0x110] sm:$0xff]
    %v438 = vld [vmem:[#allocation3 + $0x118] sm:$0xff]
    %v439 = vld [vmem:[#allocation3 + $0x120] sm:$0xff]
    %v440 = vld [vmem:[#allocation3 + $0x128] sm:$0xff]
    %v441 = vld [vmem:[#allocation3 + $0x130] sm:$0xff]
    %v442 = vld [vmem:[#allocation3 + $0x138] sm:$0xff]
    %v443 = vld [vmem:[#allocation3 + $0x140] sm:$0xff]
    %v444 = vld [vmem:[#allocation3 + $0x148] sm:$0xff]
    %v445 = vld [vmem:[#allocation3 + $0x150] sm:$0xff]
    %v446 = vld [vmem:[#allocation3 + $0x158] sm:$0xff]
    %v447 = vld [vmem:[#allocation3 + $0x160] sm:$0xff]
    %v448 = vld [vmem:[#allocation3 + $0x168] sm:$0xff]
    %v449 = vld [vmem:[#allocation3 + $0x170] sm:$0xff]
    %v450 = vld [vmem:[#allocation3 + $0x178] sm:$0xff]
    %v451 = vld [vmem:[#allocation3 + $0x180] sm:$0xff]
    %v452 = vld [vmem:[#allocation3 + $0x188] sm:$0xff]
    %v453 = vld [vmem:[#allocation3 + $0x190] sm:$0xff]
    %v454 = vld [vmem:[#allocation3 + $0x198] sm:$0xff]
    %v455 = vld [vmem:[#allocation3 + $0x1a0] sm:$0xff]
    %v456 = vld [vmem:[#allocation3 + $0x1a8] sm:$0xff]
    %v457 = vld [vmem:[#allocation3 + $0x1b0] sm:$0xff]
    %v458 = vld [vmem:[#allocation3 + $0x1b8] sm:$0xff]
    %v459 = vld [vmem:[#allocation3 + $0x1c0] sm:$0xff]
    %v460 = vld [vmem:[#allocation3 + $0x1c8] sm:$0xff]
    %v461 = vld [vmem:[#allocation3 + $0x1d0] sm:$0xff]
    %v462 = vld [vmem:[#allocation3 + $0x1d8] sm:$0xff]
    %v463 = vld [vmem:[#allocation3 + $0x1e0] sm:$0xff]
    %v464 = vld [vmem:[#allocation3 + $0x1e8] sm:$0xff]
    %v465 = vld [vmem:[#allocation3 + $0x1f0] sm:$0xff]
    %v466 = vld [vmem:[#allocation3 + $0x1f8] sm:$0xff]
    %v467 = vld [vmem:[%s6] sm:$0x3]
    %v469 = vlaneseq
    %v470 = vshrl.u32 %v469, 7
    %v471 = vsub.s32 0, %v470
    %v472 = vrot.slane %v467, %v471
    %v473 = vlaneseq
    %v474 = vshrl.u32 %v473, 7
    %v475 = vsub.s32 1, %v474
    %v476 = vrot.slane %v467, %v475
    %479 = vmatprep.subr.mxu0 %v404
    %480 = vmatpush1.msra.mxu0 %v403
    %481 = vmatprep.subr.mxu0 %v406
    %482 = vmatpush1.msra.mxu0 %v405
    %483 = vmatprep.subr.mxu0 %v408
    %484 = vmatpush1.msra.mxu0 %v407
    %485 = vmatprep.subr.mxu0 %v410
    %486 = vmatpush1.msra.mxu0 %v409
    %487 = vmatprep.subr.mxu0 %v412
    %488 = vmatpush1.msra.mxu0 %v411
    %489 = vmatprep.subr.mxu0 %v414
    %490 = vmatpush1.msra.mxu0 %v413
    %491 = vmatprep.subr.mxu0 %v416
    %492 = vmatpush1.msra.mxu0 %v415
    %493 = vmatprep.subr.mxu0 %v418
    %494 = vmatpush1.msra.mxu0 %v417
    %495 = vmatprep.subr.mxu0 %v420
    %496 = vmatpush1.msra.mxu0 %v419
    %497 = vmatprep.subr.mxu0 %v422
    %498 = vmatpush1.msra.mxu0 %v421
    %499 = vmatprep.subr.mxu0 %v424
    %500 = vmatpush1.msra.mxu0 %v423
    %501 = vmatprep.subr.mxu0 %v426
    %502 = vmatpush1.msra.mxu0 %v425
    %503 = vmatprep.subr.mxu0 %v428
    %504 = vmatpush1.msra.mxu0 %v427
    %505 = vmatprep.subr.mxu0 %v430
    %506 = vmatpush1.msra.mxu0 %v429
    %507 = vmatprep.subr.mxu0 %v432
    %508 = vmatpush1.msra.mxu0 %v431
    %509 = vmatprep.subr.mxu0 %v434
    %510 = vmatpush1.msra.mxu0 %v433
    %511 = vmatprep.subr.mxu0 %v436
    %512 = vmatpush1.msra.mxu0 %v435
    %513 = vmatprep.subr.mxu0 %v438
    %514 = vmatpush1.msra.mxu0 %v437
    %515 = vmatprep.subr.mxu0 %v440
    %516 = vmatpush1.msra.mxu0 %v439
    %517 = vmatprep.subr.mxu0 %v442
    %518 = vmatpush1.msra.mxu0 %v441
    %519 = vmatprep.subr.mxu0 %v444
    %520 = vmatpush1.msra.mxu0 %v443
    %521 = vmatprep.subr.mxu0 %v446
    %522 = vmatpush1.msra.mxu0 %v445
    %523 = vmatprep.subr.mxu0 %v448
    %524 = vmatpush1.msra.mxu0 %v447
    %525 = vmatprep.subr.mxu0 %v450
    %526 = vmatpush1.msra.mxu0 %v449
    %527 = vmatprep.subr.mxu0 %v452
    %528 = vmatpush1.msra.mxu0 %v451
    %529 = vmatprep.subr.mxu0 %v454
    %530 = vmatpush1.msra.mxu0 %v453
    %531 = vmatprep.subr.mxu0 %v456
    %532 = vmatpush1.msra.mxu0 %v455
    %533 = vmatprep.subr.mxu0 %v458
    %534 = vmatpush1.msra.mxu0 %v457
    %535 = vmatprep.subr.mxu0 %v460
    %536 = vmatpush1.msra.mxu0 %v459
    %537 = vmatprep.subr.mxu0 %v462
    %538 = vmatpush1.msra.mxu0 %v461
    %539 = vmatprep.subr.mxu0 %v464
    %540 = vmatpush1.msra.mxu0 %v463
    %541 = vmatprep.subr.mxu0 %v466
    %542 = vmatpush1.msra.mxu0 %v465
    %543 = vmatprep.mubr.f32.mxu0 %v388
    %544 = vmatmul.mubr.f32.gmra.mrb[0].mxu0 %v387
    %v545 = vpop.f32.mrb[0].mxu0
    %v546 = vadd.f32 %v472, %v545
    %v547 = vpop.f32.mrb[0].mxu0
    %v548 = vadd.f32 %v476, %v547
    %549 = vmatprep.mubr.f32.mxu0 %v390
    %550 = vmatmul.mubr.f32.gmra.mrb[0].mxu0 %v389
    %v551 = vpop.f32.mrb[0].mxu0
    %v552 = vadd.f32 %v472, %v551
    %v553 = vpop.f32.mrb[0].mxu0
    %v554 = vadd.f32 %v476, %v553
    %555 = vmatprep.mubr.f32.mxu0 %v392
    %556 = vmatmul.mubr.f32.gmra.mrb[0].mxu0 %v391
    %v557 = vpop.f32.mrb[0].mxu0
    %v558 = vadd.f32 %v472, %v557
    %v559 = vpop.f32.mrb[0].mxu0
    %v560 = vadd.f32 %v476, %v559
    %561 = vmatprep.mubr.f32.mxu0 %v394
    %562 = vmatmul.mubr.f32.gmra.mrb[0].mxu0 %v393
    %v563 = vpop.f32.mrb[0].mxu0
    %v564 = vadd.f32 %v472, %v563
    %v565 = vpop.f32.mrb[0].mxu0
    %v566 = vadd.f32 %v476, %v565
    %567 = vmatprep.mubr.f32.mxu0 %v396
    %568 = vmatmul.mubr.f32.gmra.mrb[0].mxu0 %v395
    %v569 = vpop.f32.mrb[0].mxu0
    %v570 = vadd.f32 %v472, %v569
    %v571 = vpop.f32.mrb[0].mxu0
    %v572 = vadd.f32 %v476, %v571
    %573 = vmatprep.mubr.f32.mxu0 %v398
    %574 = vmatmul.mubr.f32.gmra.mrb[0].mxu0 %v397
    %v575 = vpop.f32.mrb[0].mxu0
    %v576 = vadd.f32 %v472, %v575
    %v577 = vpop.f32.mrb[0].mxu0
    %v578 = vadd.f32 %v476, %v577
    %579 = vmatprep.mubr.f32.mxu0 %v400
    %580 = vmatmul.mubr.f32.gmra.mrb[0].mxu0 %v399
    %v581 = vpop.f32.mrb[0].mxu0
    %v582 = vadd.f32 %v472, %v581
    %v583 = vpop.f32.mrb[0].mxu0
    %v584 = vadd.f32 %v476, %v583
    %585 = vmatprep.mubr.f32.mxu0 %v402
    %586 = vmatmul.mubr.f32.gmra.mrb[0].mxu0 %v401
    %v587 = vpop.f32.mrb[0].mxu0
    %v588 = vadd.f32 %v472, %v587
    %v589 = vpop.f32.mrb[0].mxu0
    %v590 = vadd.f32 %v476, %v589
    %591 = vdwg.mxu0
    %v592 = vmax.f32 %v546, 0.0
    %v593 = vmax.f32 %v548, 0.0
    %v594 = vmax.f32 %v552, 0.0
    %v595 = vmax.f32 %v554, 0.0
    %v596 = vmax.f32 %v558, 0.0
    %v597 = vmax.f32 %v560, 0.0
    %v598 = vmax.f32 %v564, 0.0
    %v599 = vmax.f32 %v566, 0.0
    %v600 = vmax.f32 %v570, 0.0
    %v601 = vmax.f32 %v572, 0.0
    %v602 = vmax.f32 %v576, 0.0
    %v603 = vmax.f32 %v578, 0.0
    %v604 = vmax.f32 %v582, 0.0
    %v605 = vmax.f32 %v584, 0.0
    %v606 = vmax.f32 %v588, 0.0
    %v607 = vmax.f32 %v590, 0.0
    %v608 = vld [vmem:[%s7] sm:$0x3]
    %v610 = vlaneseq
    %v611 = vshrl.u32 %v610, 7
    %v612 = vsub.s32 0, %v611
    %v613 = vrot.slane %v608, %v612
    %v614 = vlaneseq
    %v615 = vshrl.u32 %v614, 7
    %v616 = vsub.s32 1, %v615
    %v617 = vrot.slane %v608, %v616
    %v620 = vmul.f32 %v592, %v613
    %v621 = vmul.f32 %v593, %v617
    %v622 = vmul.f32 %v594, %v613
    %v623 = vmul.f32 %v595, %v617
    %v624 = vmul.f32 %v596, %v613
    %v625 = vmul.f32 %v597, %v617
    %v626 = vmul.f32 %v598, %v613
    %v627 = vmul.f32 %v599, %v617
    %v628 = vmul.f32 %v600, %v613
    %v629 = vmul.f32 %v601, %v617
    %v630 = vmul.f32 %v602, %v613
    %v631 = vmul.f32 %v603, %v617
    %v632 = vmul.f32 %v604, %v613
    %v633 = vmul.f32 %v605, %v617
    %v634 = vmul.f32 %v606, %v613
    %v635 = vmul.f32 %v607, %v617
    %v636 = vadd.f32 %v620, %v621
    %637 = vadd.xlane.f32.xlu0 %v636
    %v638 = vpop.xlane.xlu0 %637
    %v639 = vadd.f32 %v622, %v623
    %640 = vadd.xlane.f32.xlu0 %v639
    %v641 = vpop.xlane.xlu0 %640
    %v642 = vadd.f32 %v624, %v625
    %643 = vadd.xlane.f32.xlu0 %v642
    %v644 = vpop.xlane.xlu0 %643
    %v645 = vadd.f32 %v626, %v627
    %646 = vadd.xlane.f32.xlu0 %v645
    %v647 = vpop.xlane.xlu0 %646
    %v648 = vadd.f32 %v628, %v629
    %649 = vadd.xlane.f32.xlu0 %v648
    %v650 = vpop.xlane.xlu0 %649
    %v651 = vadd.f32 %v630, %v631
    %652 = vadd.xlane.f32.xlu0 %v651
    %v653 = vpop.xlane.xlu0 %652
    %v654 = vadd.f32 %v632, %v633
    %655 = vadd.xlane.f32.xlu0 %v654
    %v656 = vpop.xlane.xlu0 %655
    %v657 = vadd.f32 %v634, %v635
    %658 = vadd.xlane.f32.xlu0 %v657
    %v659 = vpop.xlane.xlu0 %658
    %v660 = vld [vmem:[#allocation2] sm:$0x1]
    %v662 = vlaneseq
    %v663 = vshrl.u32 %v662, 7
    %v664 = vsub.s32 0, %v663
    %v665 = vrot.slane %v660, %v664
    %v667 = vadd.f32 %v638, %v665
    %v668 = vadd.f32 %v641, %v665
    %v669 = vadd.f32 %v644, %v665
    %v670 = vadd.f32 %v647, %v665
    %v671 = vadd.f32 %v650, %v665
    %v672 = vadd.f32 %v653, %v665
    %v673 = vadd.f32 %v656, %v665
    %v674 = vadd.f32 %v659, %v665
    %675 = vxpose.xlu0.b32.start [1/16] %v667, 128
    %676 = vxpose.xlu0.b32.cont [2/16] %v668, 128
    %677 = vxpose.xlu0.b32.cont [3/16] %v669, 128
    %678 = vxpose.xlu0.b32.cont [4/16] %v670, 128
    %679 = vxpose.xlu0.b32.cont [5/16] %v671, 128
    %680 = vxpose.xlu0.b32.cont [6/16] %v672, 128
    %681 = vxpose.xlu0.b32.cont [7/16] %v673, 128
    %682 = vxpose.xlu0.b32.cont [8/16] %v674, 128
    %683 = vxpose.xlu0.b32.cont [9/16] 0.0, 128
    %684 = vxpose.xlu0.b32.cont [10/16] 0.0, 128
    %685 = vxpose.xlu0.b32.cont [11/16] 0.0, 128
    %686 = vxpose.xlu0.b32.cont [12/16] 0.0, 128
    %687 = vxpose.xlu0.b32.cont [13/16] 0.0, 128
    %688 = vxpose.xlu0.b32.cont [14/16] 0.0, 128
    %689 = vxpose.xlu0.b32.cont [15/16] 0.0, 128
    %690 = vxpose.xlu0.b32.end [16/16] 0.0, 128
    %v691 = vpop.trf.xlu0
    %v692 = vpop.trf.xlu0
    %v693 = vpop.trf.xlu0
    %v694 = vpop.trf.xlu0
    %v695 = vpop.trf.xlu0
    %v696 = vpop.trf.xlu0
    %v697 = vpop.trf.xlu0
    %v698 = vpop.trf.xlu0
    %v699 = vpop.trf.xlu0
    %v700 = vpop.trf.xlu0
    %v701 = vpop.trf.xlu0
    %v702 = vpop.trf.xlu0
    %v703 = vpop.trf.xlu0
    %v704 = vpop.trf.xlu0
    %v705 = vpop.trf.xlu0
    %v706 = vpop.trf.xlu0
    %vm707 = vcmask 516096
    %708 = vst.msk [vmem:[#allocation6] sm:$0x1] %vm707, %v691
    // Predicated region
    $region42: #{critic_forward.1} parent=1 // pred_check
      _
    $region43: #{critic_forward.1} parent=1 // pred_check_branch
      %710 = sbr.rel (0) target = $region45
    $region44: #{critic_forward.1} parent=1 // pred_region
      %s712 = ssub.s32 16, 16
      %713 = vsyncadd [#allocation5], %s712
      %s715 = sshll.u32 [#allocation6], 4
      %s716 = int_to_ptr.vmem [resolvable:$true] %s715
      %718 = dma.vmem_to_hbm [thread:$0]  %s716, 16, %s9, [#allocation5]
    $region45: #{critic_forward.1} parent=1 // pred_fallthru
      _
    // Predicated region
    $region46: #{critic_forward.1} parent=1 // pred_check
      _
    $region47: #{critic_forward.1} parent=1 // pred_check_branch
      %720 = sbr.rel (0) target = $region49
    $region48: #{critic_forward.1} parent=1 // pred_region
      %721 = dma.done [#allocation5], 16
    $region49: #{critic_forward.1} parent=1 // pred_fallthru
      _
    %722 = vsyncpa [#allocation4], 1
    %723 = vsyncpa [#allocation5], 1

</llo_original>
